<compile_context>
chip_gen: v6e
topology: v6e:2x2x1
jax: 0.10.0
libtpu: 0.0.40
codegen_flags: <defaults>
</compile_context>

<pallas_src>
import jax
import jax.numpy as jnp
from jax.experimental import pallas as pl
from jax.experimental.pallas import tpu as pltpu

LANE = 128


def _round_up(n, m):
    return ((n + m - 1) // m) * m


# ----------------------------------------------------------------------------
# Kernel 1: BatchNorm1d batch statistics -> per-channel affine (scale, shift).
# Run once over the whole batch so the main kernel can be batch-parallel.
# ----------------------------------------------------------------------------
def _bn_stats_kernel(x_ref, gamma_ref, beta_ref, scale_ref, shift_ref):
    x = x_ref[...]                                     # (B, L, CP) f32
    B, L, CP = x.shape
    x2 = x.reshape(B * L, CP)
    mean = jnp.mean(x2, axis=0, keepdims=True)         # (1, CP)
    var = jnp.mean((x2 - mean) ** 2, axis=0, keepdims=True)   # biased (training mode)
    s = gamma_ref[...] * jax.lax.rsqrt(var + 1e-5)
    scale_ref[...] = s
    shift_ref[...] = beta_ref[...] - mean * s


# ----------------------------------------------------------------------------
# Kernel 2: fused encoder (affine BN + 6 convs + residual stack), one batch
# element per grid step.  Weights arrive in im2col layout (K*CP, CP).
# ----------------------------------------------------------------------------
def _encoder_kernel(x_ref, scale_ref, shift_ref,
                    w1_ref, b1_ref, w2_ref, b2_ref, w3_ref, b3_ref,
                    w4_ref, b4_ref, w5_ref, b5_ref,
                    r0w1_ref, r0w2_ref, r1w1_ref, r1w2_ref,
                    wo_ref, bo_ref,
                    out_ref,
                    hp_ref, hq_ref):
    L = x_ref.shape[1]
    CP = x_ref.shape[2]
    L2 = out_ref.shape[1]

    # Zero the halo rows of the padded scratches once per grid step (rows
    # 1..L / 1..L2 hold the current activation; rows 0 and last are the pad).
    zrow = jnp.zeros((1, CP), jnp.float32)
    hp_ref[0:1, :] = zrow
    hp_ref[L + 1:L + 2, :] = zrow
    hq_ref[0:1, :] = zrow
    hq_ref[L2 + 1:L2 + 2, :] = zrow

    def conv_same3(src_ref, act, n, w_ref, b_ref):
        # src_ref rows 1..n hold `act`; rows 0 and n+1 are zero halos.
        # Center tap reuses the in-register activation (saves one unaligned
        # sublane load); im2col -> single (n, 3*CP) x (3*CP, CP) MXU dot.
        seg = jnp.concatenate(
            [src_ref[0:n, :], act, src_ref[2:n + 2, :]], axis=-1)
        y = jnp.dot(seg, w_ref[...], preferred_element_type=jnp.float32)
        if b_ref is not None:
            y = y + b_ref[...]
        return y

    # BatchNorm as a folded per-channel affine (stats from _bn_stats_kernel).
    xn = x_ref[0] * scale_ref[...] + shift_ref[...]          # (L, CP)

    # conv_1 (k=3, pad=1) + ReLU
    hp_ref[1:L + 1, :] = xn
    h1 = jnp.maximum(conv_same3(hp_ref, xn, L, w1_ref, b1_ref), 0.0)

    # conv_2 (k=3, pad=1) + ReLU, residual
    hp_ref[1:L + 1, :] = h1
    h2 = jnp.maximum(conv_same3(hp_ref, h1, L, w2_ref, b2_ref), 0.0) + h1

    # conv_3 (k=4, stride=2, valid) + ReLU: output rows gathered with
    # sublane-strided reads (no selection matmul), one im2col dot.
    hp_ref[1:L + 1, :] = h2
    seg3 = jnp.concatenate(
        [hp_ref[pl.ds(1 + k, L2, stride=2), :] for k in range(4)], axis=-1)
    h3 = jnp.dot(seg3, w3_ref[...], preferred_element_type=jnp.float32)
    h3 = jnp.maximum(h3 + b3_ref[...], 0.0)                  # (L2, CP)

    # conv_4 / conv_5 (k=3, pad=1) + ReLU, residual
    hq_ref[1:L2 + 1, :] = h3
    h4 = jnp.maximum(conv_same3(hq_ref, h3, L2, w4_ref, b4_ref), 0.0) + h3
    hq_ref[1:L2 + 1, :] = h4
    h5 = jnp.maximum(conv_same3(hq_ref, h4, L2, w5_ref, b5_ref), 0.0) + h4

    # residual stack: 2 x [ReLU -> conv(k=3,pad=1,no bias) -> ReLU ->
    #                      conv(k=1,no bias)] with additive skip, final ReLU.
    r = h5
    for rw1_ref, rw2_ref in ((r0w1_ref, r0w2_ref), (r1w1_ref, r1w2_ref)):
        a = jnp.maximum(r, 0.0)
        hq_ref[1:L2 + 1, :] = a
        t = jnp.maximum(conv_same3(hq_ref, a, L2, rw1_ref, None), 0.0)
        t = jnp.dot(t, rw2_ref[...], preferred_element_type=jnp.float32)
        r = r + t
    r = jnp.maximum(r, 0.0)

    # conv_out (k=3, pad=1, with bias), no activation; lane-dense store.
    hq_ref[1:L2 + 1, :] = r
    out_ref[0] = conv_same3(hq_ref, r, L2, wo_ref, bo_ref)


# ----------------------------------------------------------------------------
# Host-side packing: pad channels to 128 lanes, reshape conv weights to the
# im2col layout (K*CP, CP).  Padded channels carry exact zeros end-to-end.
# ----------------------------------------------------------------------------
def pack_params(params, CP):
    def pack_w(w):                       # (K, Cin, Cout) -> (K*CP, CP)
        K, cin, cout = w.shape
        wp = jnp.zeros((K, CP, CP), jnp.float32).at[:, :cin, :cout].set(w)
        return wp.reshape(K * CP, CP)

    def pack_row(v):                     # (1, C) or (C,) -> (1, CP)
        v = jnp.asarray(v, jnp.float32).reshape(1, -1)
        return jnp.zeros((1, CP), jnp.float32).at[:, :v.shape[1]].set(v)

    out = {}
    for k, v in params.items():
        if v.ndim == 3:
            out[k] = pack_w(v)
        else:
            out[k] = pack_row(v)
    return out


# ----------------------------------------------------------------------------
# Wrapper: layout transposes / channel padding + two pallas_calls.
# ----------------------------------------------------------------------------
def mfcc_conv_encoder(x_ncw, params):
    """x_ncw: MFCC features, PyTorch layout (B, numcep*3, L) float32.
    Returns (B, num_outs, (L-4)//2 + 1) in PyTorch NCW layout."""
    B, C, L = x_ncw.shape
    assert L >= 4, "conv_3 (k=4, stride=2, valid) needs L >= 4"
    H = params["w1"].shape[2]
    RH = params["r0w1"].shape[2]
    num_outs = params["wo"].shape[2]
    CP = _round_up(max(C, H, RH, num_outs), LANE)
    L2 = (L - 4) // 2 + 1

    # channels-last + lane padding
    x_blc = jnp.transpose(x_ncw, (0, 2, 1)).astype(jnp.float32)     # (B, L, C)
    x_pad = jnp.zeros((B, L, CP), jnp.float32).at[:, :, :C].set(x_blc)

    p = pack_params(params, CP)

    # --- pass 1: BatchNorm batch statistics -> per-channel scale/shift ------
    scale, shift = pl.pallas_call(
        _bn_stats_kernel,
        out_shape=(jax.ShapeDtypeStruct((1, CP), jnp.float32),
                   jax.ShapeDtypeStruct((1, CP), jnp.float32)),
        grid=(1,),
        in_specs=[pl.BlockSpec((B, L, CP), lambda i: (0, 0, 0)),
                  pl.BlockSpec((1, CP), lambda i: (0, 0)),
                  pl.BlockSpec((1, CP), lambda i: (0, 0))],
        out_specs=(pl.BlockSpec((1, CP), lambda i: (0, 0)),
                   pl.BlockSpec((1, CP), lambda i: (0, 0))),
        compiler_params=pltpu.CompilerParams(
            dimension_semantics=("arbitrary",)),
    )(x_pad, p["gamma"], p["beta"])

    # --- pass 2: batch-parallel fused encoder --------------------------------
    args = (x_pad, scale, shift,
            p["w1"], p["b1"], p["w2"], p["b2"], p["w3"], p["b3"],
            p["w4"], p["b4"], p["w5"], p["b5"],
            p["r0w1"], p["r0w2"], p["r1w1"], p["r1w2"],
            p["wo"], p["bo"])

    def const_spec(a):
        return pl.BlockSpec(a.shape, lambda b, _nd=a.ndim: (0,) * _nd)

    in_specs = [pl.BlockSpec((1, L, CP), lambda b: (b, 0, 0))]
    in_specs += [const_spec(a) for a in args[1:]]

    out_pad = pl.pallas_call(
        _encoder_kernel,
        out_shape=jax.ShapeDtypeStruct((B, L2, CP), jnp.float32),
        grid=(B,),
        in_specs=in_specs,
        out_specs=pl.BlockSpec((1, L2, CP), lambda b: (b, 0, 0)),
        scratch_shapes=[pltpu.VMEM((L + 2, CP), jnp.float32),
                        pltpu.VMEM((L2 + 2, CP), jnp.float32)],
        compiler_params=pltpu.CompilerParams(
            dimension_semantics=("parallel",),
            vmem_limit_bytes=48 * 1024 * 1024),
    )(*args)

    # drop padded channels, back to PyTorch NCW layout
    return jnp.transpose(out_pad[:, :, :num_outs], (0, 2, 1))


# ----------------------------------------------------------------------------
# Deterministic parameter initialization (synthetic, not a checkpoint).
# Weights are stored as (K, Cin, Cout) -- PyTorch's (Cout, Cin, K) transposed.
# ----------------------------------------------------------------------------
def init_params(key, C, H, RH, num_outs):
    keys = jax.random.split(key, 20)
    ki = iter(keys)

    def conv_w(k, K, cin, cout):
        std = (2.0 / (K * cin)) ** 0.5          # kaiming-normal style
        return std * jax.random.normal(k, (K, cin, cout), jnp.float32)

    def conv_b(k, K, cin, cout):
        bound = 1.0 / (K * cin) ** 0.5
        return jax.random.uniform(k, (1, cout), jnp.float32, -bound, bound)

    return {
        "gamma": jnp.ones((1, C), jnp.float32),
        "beta": jnp.zeros((1, C), jnp.float32),
        "w1": conv_w(next(ki), 3, C, H), "b1": conv_b(next(ki), 3, C, H),
        "w2": conv_w(next(ki), 3, H, H), "b2": conv_b(next(ki), 3, H, H),
        "w3": conv_w(next(ki), 4, H, H), "b3": conv_b(next(ki), 4, H, H),
        "w4": conv_w(next(ki), 3, H, H), "b4": conv_b(next(ki), 3, H, H),
        "w5": conv_w(next(ki), 3, H, H), "b5": conv_b(next(ki), 3, H, H),
        "r0w1": conv_w(next(ki), 3, H, RH), "r0w2": conv_w(next(ki), 1, RH, H),
        "r1w1": conv_w(next(ki), 3, H, RH), "r1w2": conv_w(next(ki), 1, RH, H),
        "wo": conv_w(next(ki), 3, H, num_outs),
        "bo": conv_b(next(ki), 3, H, num_outs),
    }


if __name__ == "__main__":
    # Small, forward-consistent shapes:
    #   numcep=4 -> features_filters = numcep*3 = 12 MFCC feature channels
    #   num_hiddens=32, num_residual_hiddens=16, num_residual_layers=2,
    #   num_outs=8, sequence length L=16  ->  output length (16-4)//2+1 = 7
    B, numcep, L = 2, 4, 16
    C = numcep * 3
    H, RH, num_outs = 32, 16, 8

    key = jax.random.PRNGKey(0)
    kx, kp = jax.random.split(key)

    # TODO(synk): MFCC front-end is skipped; `x` below stands in for the
    # (B, numcep*3, L) feature tensor that self._mfcc(inputs) would produce.
    x = jax.random.normal(kx, (B, C, L), jnp.float32)
    params = init_params(kp, C, H, RH, num_outs)

    out = mfcc_conv_encoder(x, params)
    out = jax.block_until_ready(out)

    assert out.shape == (B, num_outs, (L - 4) // 2 + 1), out.shape
    assert out.dtype == jnp.float32
    print("KERNEL_OK")
</pallas_src>

<mosaic_0001>
module attributes {stable_mosaic.version = 11 : i64} {
  func.func @_bn_stats_kernel(%arg0: i32, %arg1: memref<2x16x128xf32, #tpu.memory_space<vmem>>, %arg2: memref<1x128xf32, #tpu.memory_space<vmem>>, %arg3: memref<1x128xf32, #tpu.memory_space<vmem>>, %arg4: memref<1x128xf32, #tpu.memory_space<vmem>>, %arg5: memref<1x128xf32, #tpu.memory_space<vmem>>) attributes {dimension_semantics = [#tpu.dimension_semantics<arbitrary>], iteration_bounds = array<i64: 1>, scalar_prefetch = 0 : i64, scratch_operands = 0 : i64, tpu.core_type = #tpu.core_type<tc>, window_params = [{pipeline_mode = #tpu.pipeline_mode<synchronous>, transform_indices = @transform_0, window_bounds = array<i64: 2, 16, 128>}, {pipeline_mode = #tpu.pipeline_mode<synchronous>, transform_indices = @transform_1, window_bounds = array<i64: 1, 128>}, {pipeline_mode = #tpu.pipeline_mode<synchronous>, transform_indices = @transform_2, window_bounds = array<i64: 1, 128>}, {pipeline_mode = #tpu.pipeline_mode<synchronous>, transform_indices = @transform_3, window_bounds = array<i64: 1, 128>}, {pipeline_mode = #tpu.pipeline_mode<synchronous>, transform_indices = @transform_4, window_bounds = array<i64: 1, 128>}]} {
    %c0 = arith.constant 0 : index
    %c0_0 = arith.constant 0 : index
    %c0_1 = arith.constant 0 : index
    %0 = vector.load %arg1[%c0, %c0_0, %c0_1] : memref<2x16x128xf32, #tpu.memory_space<vmem>>, vector<2x16x128xf32>
    %1 = vector.shape_cast %0 : vector<2x16x128xf32> to vector<32x128xf32>
    %cst = arith.constant dense<0.000000e+00> : vector<128xf32>
    %2 = vector.multi_reduction <add>, %1, %cst [0] : vector<32x128xf32> to vector<128xf32>
    %3 = vector.shape_cast %2 : vector<128xf32> to vector<1x128xf32>
    %cst_2 = arith.constant 3.200000e+01 : f32
    %4 = vector.broadcast %cst_2 : f32 to vector<1x128xf32>
    %5 = arith.divf %3, %4 : vector<1x128xf32>
    %6 = vector.broadcast %5 : vector<1x128xf32> to vector<32x128xf32>
    %7 = arith.subf %1, %6 : vector<32x128xf32>
    %8 = arith.mulf %7, %7 : vector<32x128xf32>
    %cst_3 = arith.constant dense<0.000000e+00> : vector<128xf32>
    %9 = vector.multi_reduction <add>, %8, %cst_3 [0] : vector<32x128xf32> to vector<128xf32>
    %10 = vector.shape_cast %9 : vector<128xf32> to vector<1x128xf32>
    %cst_4 = arith.constant 3.200000e+01 : f32
    %11 = vector.broadcast %cst_4 : f32 to vector<1x128xf32>
    %12 = arith.divf %10, %11 : vector<1x128xf32>
    %c0_5 = arith.constant 0 : index
    %c0_6 = arith.constant 0 : index
    %13 = vector.load %arg2[%c0_5, %c0_6] : memref<1x128xf32, #tpu.memory_space<vmem>>, vector<1x128xf32>
    %cst_7 = arith.constant 9.99999974E-6 : f32
    %14 = vector.broadcast %cst_7 : f32 to vector<1x128xf32>
    %15 = arith.addf %12, %14 : vector<1x128xf32>
    %16 = math.rsqrt %15 : vector<1x128xf32>
    %17 = arith.mulf %13, %16 : vector<1x128xf32>
    %c0_8 = arith.constant 0 : index
    %c0_9 = arith.constant 0 : index
    %18 = vector.load %arg4[%c0_8, %c0_9] : memref<1x128xf32, #tpu.memory_space<vmem>>, vector<1x128xf32>
    tpu.vector_store %arg4[%c0_8, %c0_9], %17 {strides = array<i32>} : memref<1x128xf32, #tpu.memory_space<vmem>>, vector<1x128xf32>,
    %c0_10 = arith.constant 0 : index
    %c0_11 = arith.constant 0 : index
    %19 = vector.load %arg3[%c0_10, %c0_11] : memref<1x128xf32, #tpu.memory_space<vmem>>, vector<1x128xf32>
    %20 = arith.mulf %5, %17 : vector<1x128xf32>
    %21 = arith.subf %19, %20 : vector<1x128xf32>
    %c0_12 = arith.constant 0 : index
    %c0_13 = arith.constant 0 : index
    %22 = vector.load %arg5[%c0_12, %c0_13] : memref<1x128xf32, #tpu.memory_space<vmem>>, vector<1x128xf32>
    tpu.vector_store %arg5[%c0_12, %c0_13], %21 {strides = array<i32>} : memref<1x128xf32, #tpu.memory_space<vmem>>, vector<1x128xf32>,
    return
  }
  func.func @transform_0(%arg0: i32) -> (i32, i32, i32) {
    %c0_i32 = arith.constant 0 : i32
    %c0_i32_0 = arith.constant 0 : i32
    %c0_i32_1 = arith.constant 0 : i32
    %c0_i32_2 = arith.constant 0 : i32
    return %c0_i32, %c0_i32_0, %c0_i32_1 : i32, i32, i32
  }
  func.func @transform_1(%arg0: i32) -> (i32, i32) {
    %c0_i32 = arith.constant 0 : i32
    %c0_i32_0 = arith.constant 0 : i32
    %c0_i32_1 = arith.constant 0 : i32
    return %c0_i32, %c0_i32_0 : i32, i32
  }
  func.func @transform_2(%arg0: i32) -> (i32, i32) {
    %c0_i32 = arith.constant 0 : i32
    %c0_i32_0 = arith.constant 0 : i32
    %c0_i32_1 = arith.constant 0 : i32
    return %c0_i32, %c0_i32_0 : i32, i32
  }
  func.func @transform_3(%arg0: i32) -> (i32, i32) {
    %c0_i32 = arith.constant 0 : i32
    %c0_i32_0 = arith.constant 0 : i32
    %c0_i32_1 = arith.constant 0 : i32
    return %c0_i32, %c0_i32_0 : i32, i32
  }
  func.func @transform_4(%arg0: i32) -> (i32, i32) {
    %c0_i32 = arith.constant 0 : i32
    %c0_i32_0 = arith.constant 0 : i32
    %c0_i32_1 = arith.constant 0 : i32
    return %c0_i32, %c0_i32_0 : i32, i32
  }
}

</mosaic_0001>

<llo_original>
// kernel: tpu_custom_call.1
$region0: #{tpu_custom_call.1}
  #allocation0 [shape = 'u32[]', space=smem, size = 0x4, offset = 0x4, fixed_abs, tag = 'smem constant byte address 0x4 - core index']
  #allocation1 [shape = 'u32[144,128]{1,0:T(1,128)}', space=vmem, size = 0x12000, scoped, tag = 'internal scratch']
  %s0 = inlined_call_operand.hbm [shape: f32[2,16,128], index: 0, kind: input, shape index: {}]
  %s1 = inlined_call_operand.vmem [shape: f32[1,128], index: 1, kind: input, shape index: {}]
  %s2 = inlined_call_operand.vmem [shape: f32[1,128], index: 2, kind: input, shape index: {}]
  %s3 = inlined_call_operand.hbm [shape: f32[1,128], index: 3, kind: output, shape index: {0}]
  %s4 = inlined_call_operand.hbm [shape: f32[1,128], index: 4, kind: output, shape index: {1}]
  %5 = xla_tuple %s3, %s4
  %s6 = sld [smem:[#allocation0]]
  $region34: #{tpu_custom_call.1} parent=0
    _
  %s8 = ssub.s32 1, %s6
  %s9 = scalar_select 0, %s8, %s6
  $region1: #{tpu_custom_call.1} parent=0
    #allocation2 [shape = 'u8[16384]{0}', space=vmem, size = 0x4000, scoped, tag = 'input window, operand 0, single buffered']
    #allocation3 [shape = 's32[1]{0}', space=sflag, size = 0x4, scoped, tag = 'scoped memory for tpu_custom_call.1']
    #allocation4 [shape = 's32[1]{0}', space=sflag, size = 0x4, scoped, tag = 'scoped memory for tpu_custom_call.1']
    #allocation5 [shape = 'u8[512]{0}', space=vmem, size = 0x400, scoped, tag = 'output window, operand 0, single buffered']
    #allocation6 [shape = 'u8[512]{0}', space=vmem, size = 0x400, scoped, tag = 'output window, operand 1, single buffered']
    #allocation7 [shape = 's32[1]{0}', space=sflag, size = 0x4, scoped, tag = 'scoped memory for tpu_custom_call.1']
    %10 = vsyncpa [#allocation3], 0
    %11 = vsyncpa [#allocation4], 0
    %12 = vsyncpa [#allocation7], 0
    // Predicated region
    $region2: #{tpu_custom_call.1} parent=1 // pred_check
      _
    $region3: #{tpu_custom_call.1} parent=1 // pred_check_branch
      %14 = sbr.rel (0) target = $region5
    $region4: #{tpu_custom_call.1} parent=1 // pred_region
      %s16 = ssub.s32 512, 512
      %17 = vsyncadd [#allocation3], %s16
      %s18 = sshll.u32 [#allocation2], 4
      %s19 = int_to_ptr.vmem [resolvable:$true] %s18
      %24 = dma.hbm_to_vmem [thread:$0]  %s0, 512, %s19, [#allocation3], 128, 128, 8
    $region5: #{tpu_custom_call.1} parent=1 // pred_fallthru
      _
    // Predicated region
    $region6: #{tpu_custom_call.1} parent=1 // pred_check
      _
    $region7: #{tpu_custom_call.1} parent=1 // pred_check_branch
      %26 = sbr.rel (0) target = $region9
    $region8: #{tpu_custom_call.1} parent=1 // pred_region
      _
    $region9: #{tpu_custom_call.1} parent=1 // pred_fallthru
      _
    // Predicated region
    $region10: #{tpu_custom_call.1} parent=1 // pred_check
      _
    $region11: #{tpu_custom_call.1} parent=1 // pred_check_branch
      %28 = sbr.rel (0) target = $region13
    $region12: #{tpu_custom_call.1} parent=1 // pred_region
      _
    $region13: #{tpu_custom_call.1} parent=1 // pred_fallthru
      _
    // Predicated region
    $region14: #{tpu_custom_call.1} parent=1 // pred_check
      _
    $region15: #{tpu_custom_call.1} parent=1 // pred_check_branch
      %30 = sbr.rel (0) target = $region17
    $region16: #{tpu_custom_call.1} parent=1 // pred_region
      %31 = dma.done [#allocation3], 512
    $region17: #{tpu_custom_call.1} parent=1 // pred_fallthru
      _
    %v32 = vld [vmem:[#allocation2] sm:$0xff]
    %v33 = vld [vmem:[#allocation2 + $0x8] sm:$0xff]
    %v34 = vld [vmem:[#allocation2 + $0x10] sm:$0xff]
    %v35 = vld [vmem:[#allocation2 + $0x18] sm:$0xff]
    %v36 = vadd.f32 %v32, %v33
    %v37 = vadd.f32 %v36, %v34
    %v38 = vadd.f32 %v37, %v35
    %v39 = vrot.slane %v38, 4
    %v40 = vadd.f32 %v38, %v39
    %v41 = vrot.slane %v40, 2
    %v42 = vadd.f32 %v40, %v41
    %v43 = vrot.slane %v42, 1
    %v44 = vadd.f32 %v42, %v43
    %v45 = vrcp.pop 32.0
    %v46 = vmul.f32 %v44, %v45
    %v47 = vsub.f32 %v32, %v46
    %v48 = vsub.f32 %v33, %v46
    %v49 = vsub.f32 %v34, %v46
    %v50 = vsub.f32 %v35, %v46
    %v51 = vmul.f32 %v47, %v47
    %v52 = vmul.f32 %v48, %v48
    %v53 = vmul.f32 %v49, %v49
    %v54 = vmul.f32 %v50, %v50
    %v55 = vadd.f32 %v51, %v52
    %v56 = vadd.f32 %v55, %v53
    %v57 = vadd.f32 %v56, %v54
    %v58 = vrot.slane %v57, 4
    %v59 = vadd.f32 %v57, %v58
    %v60 = vrot.slane %v59, 2
    %v61 = vadd.f32 %v59, %v60
    %v62 = vrot.slane %v61, 1
    %v63 = vadd.f32 %v61, %v62
    %v64 = vmul.f32 %v63, %v45
    %v65 = vld [vmem:[%s1] sm:$0x1]
    %v66 = vadd.f32 %v64, 1e-05
    %v67 = vrsqrt.pop %v66
    %v68 = vmul.f32 %v65, %v67
    %69 = vst [vmem:[#allocation5] sm:$0x1] %v68
    %v70 = vld [vmem:[%s2] sm:$0x1]
    %v71 = vmul.f32 %v46, %v68
    %v72 = vsub.f32 %v70, %v71
    %73 = vst [vmem:[#allocation6] sm:$0x1] %v72
    // Predicated region
    $region18: #{tpu_custom_call.1} parent=1 // pred_check
      _
    $region19: #{tpu_custom_call.1} parent=1 // pred_check_branch
      %75 = sbr.rel (0) target = $region21
    $region20: #{tpu_custom_call.1} parent=1 // pred_region
      %s77 = ssub.s32 16, 16
      %78 = vsyncadd [#allocation4], %s77
      %s80 = sshll.u32 [#allocation5], 4
      %s81 = int_to_ptr.vmem [resolvable:$true] %s80
      %83 = dma.vmem_to_hbm [thread:$0]  %s81, 16, %s3, [#allocation4]
    $region21: #{tpu_custom_call.1} parent=1 // pred_fallthru
      _
    // Predicated region
    $region22: #{tpu_custom_call.1} parent=1 // pred_check
      _
    $region23: #{tpu_custom_call.1} parent=1 // pred_check_branch
      %85 = sbr.rel (0) target = $region25
    $region24: #{tpu_custom_call.1} parent=1 // pred_region
      %s87 = ssub.s32 16, 16
      %88 = vsyncadd [#allocation7], %s87
      %s90 = sshll.u32 [#allocation6], 4
      %s91 = int_to_ptr.vmem [resolvable:$true] %s90
      %93 = dma.vmem_to_hbm [thread:$0]  %s91, 16, %s4, [#allocation7]
    $region25: #{tpu_custom_call.1} parent=1 // pred_fallthru
      _
    // Predicated region
    $region26: #{tpu_custom_call.1} parent=1 // pred_check
      _
    $region27: #{tpu_custom_call.1} parent=1 // pred_check_branch
      %95 = sbr.rel (0) target = $region29
    $region28: #{tpu_custom_call.1} parent=1 // pred_region
      %96 = dma.done [#allocation4], 16
    $region29: #{tpu_custom_call.1} parent=1 // pred_fallthru
      _
    // Predicated region
    $region30: #{tpu_custom_call.1} parent=1 // pred_check
      _
    $region31: #{tpu_custom_call.1} parent=1 // pred_check_branch
      %98 = sbr.rel (0) target = $region33
    $region32: #{tpu_custom_call.1} parent=1 // pred_region
      %99 = dma.done [#allocation7], 16
    $region33: #{tpu_custom_call.1} parent=1 // pred_fallthru
      _
    %100 = vsyncpa [#allocation3], 1
    %101 = vsyncpa [#allocation4], 1
    %102 = vsyncpa [#allocation7], 1

</llo_original>
